<compile_context>
chip_gen: v7x
topology: tpu7x:2x2x1
jax: 0.10.0
libtpu: 0.0.40
codegen_flags: <defaults>
</compile_context>

<pallas_src>
import jax
import jax.numpy as jnp
import numpy as np
from jax.experimental import pallas as pl
from jax.experimental.pallas import tpu as pltpu


def positional_encoding_table(n_position: int, d_model: int) -> jnp.ndarray:
    """Standard (frozen) sinusoidal positional encoding table, shape (P, E)."""
    pos = np.arange(n_position, dtype=np.float64)[:, None]
    dim = np.arange(d_model, dtype=np.float64)[None, :]
    angles = pos / np.power(10000.0, 2.0 * (dim // 2) / d_model)
    table = np.zeros((n_position, d_model), dtype=np.float64)
    table[:, 0::2] = np.sin(angles[:, 0::2])
    table[:, 1::2] = np.cos(angles[:, 1::2])
    return jnp.asarray(table, dtype=jnp.float32)


def _qgb_kernel(eo_ref, wh_ref, bh_ref, ps_ref, q_ref, eot_ref):
    # eo_ref  : (B, C, S, E) VMEM  encoder outputs (native layout)
    # wh_ref  : (1, E)       VMEM  history_proj weight
    # bh_ref  : (1,)         SMEM  history_proj bias
    # ps_ref  : (P,)         SMEM  relu(pos_proj(pos_table)) position scores
    # q_ref   : (B, S, P*E)  VMEM  lane-dense queries output
    # eot_ref : (B, S, C*E)  VMEM  lane-dense transposed encoder outputs
    eo = eo_ref[...]                                   # (B, C, S, E)
    wh = wh_ref[...]                                   # (1, E) broadcasts over eo
    bh = bh_ref[0]

    # history_scores = relu(Linear(eo)) -> (B, C, S, 1)
    hs = jnp.maximum(jnp.sum(eo * wh, axis=-1, keepdims=True) + bh, 0.0)

    # Rank-1 channel contraction: m[b, s, e] = sum_c hs[b, c, s] * eo[b, c, s, e]
    m = jnp.sum(hs * eo, axis=1)                       # (B, S, E)

    # queries[b, s, p*E + e] = ps[p] * m[b, s, e]
    # Assemble the full 256-lane row (P scalar-broadcast slabs concatenated
    # along lanes) so the write is a single unmasked 256-wide store.
    P = ps_ref.shape[0]
    q = jnp.concatenate([ps_ref[p] * m for p in range(P)], axis=-1)  # (B, S, P*E)
    q_ref[...] = q.astype(q_ref.dtype)

    # Fused encoder_outputs.transpose(1, 2): eot[b, s, c*E + e] = eo[b, c, s, e],
    # written lane-dense as (B, S, C*E = 128) -> exact 128-lane unmasked stores.
    C = eo.shape[1]
    eot = jnp.concatenate([eo[:, c, :, :] for c in range(C)], axis=-1)  # (B, S, C*E)
    eot_ref[...] = eot.astype(eot_ref.dtype)


def query_generation_block(encoder_outputs, wh, bh, wp, bp, pos_table,
                           return_encoder_outputs: bool = True):
    """JAX/Pallas equivalent of QueryGenerationBlock.forward.

    encoder_outputs: (B, C, S, E) float32
    wh, wp: (1, E) linear weights;  bh, bp: (1,) biases
    pos_table: (P, E) frozen positional encoding table
    Returns (queries (B, S, P, E)[, encoder_outputs.transpose(1,2) (B, S, C, E)]).
    """
    B, C, S, E = encoder_outputs.shape
    P = pos_table.shape[0]

    # Grid-invariant, parameter-only position scores: relu(pos_proj(pos_table)) -> (P,)
    ps = jnp.maximum(pos_table @ wp[0] + bp[0], 0.0).astype(jnp.float32)

    q_flat, eot_flat = pl.pallas_call(
        _qgb_kernel,
        out_shape=(
            jax.ShapeDtypeStruct((B, S, P * E), jnp.float32),
            jax.ShapeDtypeStruct((B, S, C * E), encoder_outputs.dtype),
        ),
        # Single grid step: total working set < 48 KiB, far under scoped VMEM;
        # every operand is one full-array block.
        in_specs=[
            pl.BlockSpec(memory_space=pltpu.MemorySpace.VMEM),   # eo (B,C,S,E)
            pl.BlockSpec(memory_space=pltpu.MemorySpace.VMEM),   # wh (1,E)
            pl.BlockSpec(memory_space=pltpu.MemorySpace.SMEM),   # bh (1,)
            pl.BlockSpec(memory_space=pltpu.MemorySpace.SMEM),   # ps (P,)
        ],
        out_specs=(
            pl.BlockSpec(memory_space=pltpu.MemorySpace.VMEM),
            pl.BlockSpec(memory_space=pltpu.MemorySpace.VMEM),
        ),
        cost_estimate=pl.CostEstimate(
            flops=4 * B * C * S * E + 2 * B * S * P * E,
            transcendentals=0,
            bytes_accessed=2 * (B * C * S * E * 4) + B * S * P * E * 4
            + (E + P + 1) * 4,
        ),
    )(encoder_outputs, wh, bh, ps)

    queries = q_flat.reshape(B, S, P, E)       # free view
    if return_encoder_outputs:
        return queries, eot_flat.reshape(B, S, C, E)   # free view
    # Kernel still writes the (tiny) eot block; it is simply dropped here.
    return queries


def _reference(encoder_outputs, wh, bh, wp, bp, pos_table):
    """Pure-JAX transliteration of the PyTorch forward, for validation."""
    hs = jnp.maximum(encoder_outputs @ wh.T + bh, 0.0)           # (B, C, S, 1)
    ps = jnp.maximum(jnp.transpose(pos_table @ wp.T + bp), 0.0)  # (1, P)
    weights = hs @ ps                                            # (B, C, S, P)
    weights = jnp.transpose(weights, (0, 2, 3, 1))               # (B, S, P, C)
    eo_t = jnp.transpose(encoder_outputs, (0, 2, 1, 3))          # (B, S, C, E)
    queries = weights @ eo_t                                     # (B, S, P, E)
    return queries, eo_t


if __name__ == "__main__":
    B, C, S, E, P = 2, 4, 16, 32, 8  # prediction_length = 8, embed_dim = 32

    key = jax.random.PRNGKey(0)
    k1, k2, k3, k4, k5 = jax.random.split(key, 5)
    x = jax.random.normal(k1, (B, C, S, E), dtype=jnp.float32)
    wh = jax.random.normal(k2, (1, E), dtype=jnp.float32) * 0.1
    bh = jax.random.normal(k3, (1,), dtype=jnp.float32) * 0.1
    wp = jax.random.normal(k4, (1, E), dtype=jnp.float32) * 0.1
    bp = jax.random.normal(k5, (1,), dtype=jnp.float32) * 0.1
    pos_table = positional_encoding_table(P, E)

    queries, eo_t = query_generation_block(x, wh, bh, wp, bp, pos_table)
    queries = jax.block_until_ready(queries)
    eo_t = jax.block_until_ready(eo_t)

    q_ref, eo_ref = _reference(x, wh, bh, wp, bp, pos_table)
    assert queries.shape == (B, S, P, E)
    assert eo_t.shape == (B, S, C, E)
    assert jnp.allclose(queries, q_ref, atol=1e-4, rtol=1e-4), float(
        jnp.max(jnp.abs(queries - q_ref)))
    assert jnp.allclose(eo_t, eo_ref)

    print("KERNEL_OK")
</pallas_src>

<mosaic_0001>
module attributes {stable_mosaic.version = 11 : i64} {
  func.func @_qgb_kernel(%arg0: memref<2x4x16x32xf32, #tpu.memory_space<vmem>>, %arg1: memref<1x32xf32, #tpu.memory_space<vmem>>, %arg2: memref<1xf32, #tpu.memory_space<smem>>, %arg3: memref<8xf32, #tpu.memory_space<smem>>, %arg4: memref<2x16x256xf32, #tpu.memory_space<vmem>>, %arg5: memref<2x16x128xf32, #tpu.memory_space<vmem>>) attributes {dimension_semantics = [], scalar_prefetch = 0 : i64, scratch_operands = 0 : i64, tpu.core_type = #tpu.core_type<tc>} {
    %c0 = arith.constant 0 : index
    %c0_0 = arith.constant 0 : index
    %c0_1 = arith.constant 0 : index
    %c0_2 = arith.constant 0 : index
    %0 = vector.load %arg0[%c0, %c0_0, %c0_1, %c0_2] : memref<2x4x16x32xf32, #tpu.memory_space<vmem>>, vector<2x4x16x32xf32>
    %c0_3 = arith.constant 0 : index
    %c0_4 = arith.constant 0 : index
    %1 = vector.load %arg1[%c0_3, %c0_4] : memref<1x32xf32, #tpu.memory_space<vmem>>, vector<1x32xf32>
    %c0_5 = arith.constant 0 : index
    %2 = memref.load %arg2[%c0_5] : memref<1xf32, #tpu.memory_space<smem>>
    %3 = vector.shape_cast %1 : vector<1x32xf32> to vector<1x1x1x32xf32>
    %4 = vector.broadcast %3 : vector<1x1x1x32xf32> to vector<2x4x16x32xf32>
    %5 = arith.mulf %0, %4 : vector<2x4x16x32xf32>
    %cst = arith.constant dense<0.000000e+00> : vector<2x4x16xf32>
    %6 = vector.multi_reduction <add>, %5, %cst [3] : vector<2x4x16x32xf32> to vector<2x4x16xf32>
    %7 = vector.shape_cast %6 : vector<2x4x16xf32> to vector<2x4x16x1xf32>
    %8 = vector.broadcast %2 : f32 to vector<2x4x16x1xf32>
    %9 = arith.addf %7, %8 : vector<2x4x16x1xf32>
    %cst_6 = arith.constant 0.000000e+00 : f32
    %10 = vector.broadcast %cst_6 : f32 to vector<2x4x16x1xf32>
    %11 = arith.maximumf %9, %10 : vector<2x4x16x1xf32>
    %12 = vector.broadcast %11 : vector<2x4x16x1xf32> to vector<2x4x16x32xf32>
    %13 = arith.mulf %12, %0 : vector<2x4x16x32xf32>
    %cst_7 = arith.constant dense<0.000000e+00> : vector<2x16x32xf32>
    %14 = vector.multi_reduction <add>, %13, %cst_7 [1] : vector<2x4x16x32xf32> to vector<2x16x32xf32>
    %c0_8 = arith.constant 0 : index
    %15 = memref.load %arg3[%c0_8] : memref<8xf32, #tpu.memory_space<smem>>
    %16 = vector.broadcast %15 : f32 to vector<2x16x32xf32>
    %17 = arith.mulf %16, %14 : vector<2x16x32xf32>
    %c1 = arith.constant 1 : index
    %18 = memref.load %arg3[%c1] : memref<8xf32, #tpu.memory_space<smem>>
    %19 = vector.broadcast %18 : f32 to vector<2x16x32xf32>
    %20 = arith.mulf %19, %14 : vector<2x16x32xf32>
    %c2 = arith.constant 2 : index
    %21 = memref.load %arg3[%c2] : memref<8xf32, #tpu.memory_space<smem>>
    %22 = vector.broadcast %21 : f32 to vector<2x16x32xf32>
    %23 = arith.mulf %22, %14 : vector<2x16x32xf32>
    %c3 = arith.constant 3 : index
    %24 = memref.load %arg3[%c3] : memref<8xf32, #tpu.memory_space<smem>>
    %25 = vector.broadcast %24 : f32 to vector<2x16x32xf32>
    %26 = arith.mulf %25, %14 : vector<2x16x32xf32>
    %c4 = arith.constant 4 : index
    %27 = memref.load %arg3[%c4] : memref<8xf32, #tpu.memory_space<smem>>
    %28 = vector.broadcast %27 : f32 to vector<2x16x32xf32>
    %29 = arith.mulf %28, %14 : vector<2x16x32xf32>
    %c5 = arith.constant 5 : index
    %30 = memref.load %arg3[%c5] : memref<8xf32, #tpu.memory_space<smem>>
    %31 = vector.broadcast %30 : f32 to vector<2x16x32xf32>
    %32 = arith.mulf %31, %14 : vector<2x16x32xf32>
    %c6 = arith.constant 6 : index
    %33 = memref.load %arg3[%c6] : memref<8xf32, #tpu.memory_space<smem>>
    %34 = vector.broadcast %33 : f32 to vector<2x16x32xf32>
    %35 = arith.mulf %34, %14 : vector<2x16x32xf32>
    %c7 = arith.constant 7 : index
    %36 = memref.load %arg3[%c7] : memref<8xf32, #tpu.memory_space<smem>>
    %37 = vector.broadcast %36 : f32 to vector<2x16x32xf32>
    %38 = arith.mulf %37, %14 : vector<2x16x32xf32>
    %39 = tpu.concatenate %17, %20, %23, %26, %29, %32, %35, %38 in 2 : vector<2x16x32xf32>, vector<2x16x32xf32>, vector<2x16x32xf32>, vector<2x16x32xf32>, vector<2x16x32xf32>, vector<2x16x32xf32>, vector<2x16x32xf32>, vector<2x16x32xf32> -> vector<2x16x256xf32>
    %c0_9 = arith.constant 0 : index
    %c0_10 = arith.constant 0 : index
    %c0_11 = arith.constant 0 : index
    %40 = vector.load %arg4[%c0_9, %c0_10, %c0_11] : memref<2x16x256xf32, #tpu.memory_space<vmem>>, vector<2x16x256xf32>
    tpu.vector_store %arg4[%c0_9, %c0_10, %c0_11], %39 {strides = array<i32>} : memref<2x16x256xf32, #tpu.memory_space<vmem>>, vector<2x16x256xf32>,
    %41 = vector.extract_strided_slice %0 {offsets = [0, 0, 0, 0], sizes = [2, 1, 16, 32], strides = [1, 1, 1, 1]} : vector<2x4x16x32xf32> to vector<2x1x16x32xf32>
    %42 = vector.shape_cast %41 : vector<2x1x16x32xf32> to vector<2x16x32xf32>
    %43 = vector.extract_strided_slice %0 {offsets = [0, 1, 0, 0], sizes = [2, 1, 16, 32], strides = [1, 1, 1, 1]} : vector<2x4x16x32xf32> to vector<2x1x16x32xf32>
    %44 = vector.shape_cast %43 : vector<2x1x16x32xf32> to vector<2x16x32xf32>
    %45 = vector.extract_strided_slice %0 {offsets = [0, 2, 0, 0], sizes = [2, 1, 16, 32], strides = [1, 1, 1, 1]} : vector<2x4x16x32xf32> to vector<2x1x16x32xf32>
    %46 = vector.shape_cast %45 : vector<2x1x16x32xf32> to vector<2x16x32xf32>
    %47 = vector.extract_strided_slice %0 {offsets = [0, 3, 0, 0], sizes = [2, 1, 16, 32], strides = [1, 1, 1, 1]} : vector<2x4x16x32xf32> to vector<2x1x16x32xf32>
    %48 = vector.shape_cast %47 : vector<2x1x16x32xf32> to vector<2x16x32xf32>
    %49 = tpu.concatenate %42, %44, %46, %48 in 2 : vector<2x16x32xf32>, vector<2x16x32xf32>, vector<2x16x32xf32>, vector<2x16x32xf32> -> vector<2x16x128xf32>
    %c0_12 = arith.constant 0 : index
    %c0_13 = arith.constant 0 : index
    %c0_14 = arith.constant 0 : index
    %50 = vector.load %arg5[%c0_12, %c0_13, %c0_14] : memref<2x16x128xf32, #tpu.memory_space<vmem>>, vector<2x16x128xf32>
    tpu.vector_store %arg5[%c0_12, %c0_13, %c0_14], %49 {strides = array<i32>} : memref<2x16x128xf32, #tpu.memory_space<vmem>>, vector<2x16x128xf32>,
    return
  }
}

</mosaic_0001>

<llo_original>
// kernel: tpu_custom_call.1
$region0: #{tpu_custom_call.1}
  #allocation0 [shape = 'u32[]', space=smem, size = 0x4, offset = 0x4, fixed_abs, tag = 'smem constant byte address 0x4 - core index']
  #allocation1 [shape = 'u32[144,128]{1,0:T(1,128)}', space=vmem, size = 0x12000, scoped, tag = 'internal scratch']
  #allocation2 [shape = 'f32[1]{0:T(128)S(6)}', space=smem, size = 0x200, scoped, tag = 'scoped memory for tpu_custom_call.1']
  %s0 = inlined_call_operand.hbm [shape: f32[2,4,16,32], index: 0, kind: input, shape index: {}]
  %s1 = inlined_call_operand.vmem [shape: f32[1,32], index: 1, kind: input, shape index: {}]
  %s2 = inlined_call_operand.<no memory space> [shape: f32[1], index: 2, kind: input, shape index: {}]
  %s3 = inlined_call_operand.vmem [shape: f32[8], index: 3, kind: input, shape index: {}]
  %s4 = inlined_call_operand.hbm [shape: f32[2,16,256], index: 4, kind: output, shape index: {0}]
  %s5 = inlined_call_operand.hbm [shape: f32[2,16,128], index: 5, kind: output, shape index: {1}]
  %6 = xla_tuple %s4, %s5
  %s7 = sld [smem:[#allocation0]]
  $region42: #{tpu_custom_call.1} parent=0
    _
  %s9 = ssub.s32 1, %s7
  %s10 = scalar_select 0, %s9, %s7
  %11 = sst [smem:[#allocation2]] %s2
  $region1: #{tpu_custom_call.1} parent=0
    #allocation3 [shape = 'u8[65536]{0}', space=vmem, size = 0x10000, scoped, tag = 'input window, operand 0, single buffered']
    #allocation4 [shape = 's32[1]{0}', space=sflag, size = 0x4, scoped, tag = 'scoped memory for tpu_custom_call.1']
    #allocation5 [shape = 's32[1]{0}', space=sflag, size = 0x4, scoped, tag = 'scoped memory for tpu_custom_call.1']
    #allocation6 [shape = 's32[1]{0}', space=sflag, size = 0x4, scoped, tag = 'scoped memory for tpu_custom_call.1']
    #allocation7 [shape = 'u8[512]{0}', space=smem, size = 0x200, scoped, tag = 'input window, operand 3, single buffered']
    #allocation8 [shape = 'u8[32768]{0}', space=vmem, size = 0x8000, scoped, tag = 'output window, operand 0, single buffered']
    #allocation9 [shape = 'u8[16384]{0}', space=vmem, size = 0x4000, scoped, tag = 'output window, operand 1, single buffered']
    #allocation10 [shape = 's32[1]{0}', space=sflag, size = 0x4, scoped, tag = 'scoped memory for tpu_custom_call.1']
    %12 = vsyncpa [#allocation4], 0
    %13 = vsyncpa [#allocation6], 0
    %14 = vsyncpa [#allocation5], 0
    %15 = vsyncpa [#allocation10], 0
    // Predicated region
    $region2: #{tpu_custom_call.1} parent=1 // pred_check
      _
    $region3: #{tpu_custom_call.1} parent=1 // pred_check_branch
      %17 = sbr.rel (0) target = $region5
    $region4: #{tpu_custom_call.1} parent=1 // pred_region
      %s19 = ssub.s32 2048, 2048
      %20 = vsyncadd [#allocation4], %s19
      %s21 = sshll.u32 [#allocation3], 4
      %s22 = int_to_ptr.vmem [resolvable:$true] %s21
      %27 = dma.hbm_to_vmem [thread:$0]  %s0, 2048, %s22, [#allocation4], 128, 128, 8
    $region5: #{tpu_custom_call.1} parent=1 // pred_fallthru
      _
    // Predicated region
    $region6: #{tpu_custom_call.1} parent=1 // pred_check
      _
    $region7: #{tpu_custom_call.1} parent=1 // pred_check_branch
      %29 = sbr.rel (0) target = $region9
    $region8: #{tpu_custom_call.1} parent=1 // pred_region
      _
    $region9: #{tpu_custom_call.1} parent=1 // pred_fallthru
      _
    // Predicated region
    $region10: #{tpu_custom_call.1} parent=1 // pred_check
      _
    $region11: #{tpu_custom_call.1} parent=1 // pred_check_branch
      %31 = sbr.rel (0) target = $region13
    $region12: #{tpu_custom_call.1} parent=1 // pred_region
      _
    $region13: #{tpu_custom_call.1} parent=1 // pred_fallthru
      _
    // Predicated region
    $region14: #{tpu_custom_call.1} parent=1 // pred_check
      _
    $region15: #{tpu_custom_call.1} parent=1 // pred_check_branch
      %33 = sbr.rel (0) target = $region17
    $region16: #{tpu_custom_call.1} parent=1 // pred_region
      %s35 = ssub.s32 16, 16
      %36 = vsyncadd [#allocation6], %s35
      %s38 = sshll.u32 %s3, 4
      %s39 = int_to_ptr.vmem [resolvable:$true] %s38
      %41 = dma.vmem_to_smem %s39, 16, [#allocation7], [#allocation6]
    $region17: #{tpu_custom_call.1} parent=1 // pred_fallthru
      _
    // Predicated region
    $region18: #{tpu_custom_call.1} parent=1 // pred_check
      _
    $region19: #{tpu_custom_call.1} parent=1 // pred_check_branch
      %43 = sbr.rel (0) target = $region21
    $region20: #{tpu_custom_call.1} parent=1 // pred_region
      %44 = dma.done [#allocation4], 2048
    $region21: #{tpu_custom_call.1} parent=1 // pred_fallthru
      _
    // Predicated region
    $region22: #{tpu_custom_call.1} parent=1 // pred_check
      _
    $region23: #{tpu_custom_call.1} parent=1 // pred_check_branch
      %46 = sbr.rel (0) target = $region25
    $region24: #{tpu_custom_call.1} parent=1 // pred_region
      %47 = dma.done [#allocation6], 16
    $region25: #{tpu_custom_call.1} parent=1 // pred_fallthru
      _
    %48 = sfence
    %v49 = vld [vmem:[#allocation3] sm:$0xff]
    %v50 = vld [vmem:[#allocation3 + $0x8] sm:$0xff]
    %v51 = vld [vmem:[#allocation3 + $0x10] sm:$0xff]
    %v52 = vld [vmem:[#allocation3 + $0x18] sm:$0xff]
    %v53 = vld [vmem:[#allocation3 + $0x20] sm:$0xff]
    %v54 = vld [vmem:[#allocation3 + $0x28] sm:$0xff]
    %v55 = vld [vmem:[#allocation3 + $0x30] sm:$0xff]
    %v56 = vld [vmem:[#allocation3 + $0x38] sm:$0xff]
    %v57 = vld [vmem:[#allocation3 + $0x40] sm:$0xff]
    %v58 = vld [vmem:[#allocation3 + $0x48] sm:$0xff]
    %v59 = vld [vmem:[#allocation3 + $0x50] sm:$0xff]
    %v60 = vld [vmem:[#allocation3 + $0x58] sm:$0xff]
    %v61 = vld [vmem:[#allocation3 + $0x60] sm:$0xff]
    %v62 = vld [vmem:[#allocation3 + $0x68] sm:$0xff]
    %v63 = vld [vmem:[#allocation3 + $0x70] sm:$0xff]
    %v64 = vld [vmem:[#allocation3 + $0x78] sm:$0xff]
    %v65 = vld [vmem:[%s1] sm:$0x1]
    %s66 = sld [smem:[#allocation2]]
    %v68 = vlaneseq
    %v69 = vshrl.u32 %v68, 7
    %v70 = vsub.s32 0, %v69
    %v71 = vrot.slane %v65, %v70
    %v73 = vmul.f32 %v49, %v71
    %v74 = vmul.f32 %v50, %v71
    %v75 = vmul.f32 %v51, %v71
    %v76 = vmul.f32 %v52, %v71
    %v77 = vmul.f32 %v53, %v71
    %v78 = vmul.f32 %v54, %v71
    %v79 = vmul.f32 %v55, %v71
    %v80 = vmul.f32 %v56, %v71
    %v81 = vmul.f32 %v57, %v71
    %v82 = vmul.f32 %v58, %v71
    %v83 = vmul.f32 %v59, %v71
    %v84 = vmul.f32 %v60, %v71
    %v85 = vmul.f32 %v61, %v71
    %v86 = vmul.f32 %v62, %v71
    %v87 = vmul.f32 %v63, %v71
    %v88 = vmul.f32 %v64, %v71
    %vm89 = vcmask 261120
    %v90 = vsel %vm89, %v73, 0.0
    %91 = vadd.xlane.f32.xlu0 %v90
    %v92 = vpop.xlane.xlu0 %91
    %v93 = vsel %vm89, %v74, 0.0
    %94 = vadd.xlane.f32.xlu0 %v93
    %v95 = vpop.xlane.xlu0 %94
    %v96 = vsel %vm89, %v75, 0.0
    %97 = vadd.xlane.f32.xlu0 %v96
    %v98 = vpop.xlane.xlu0 %97
    %v99 = vsel %vm89, %v76, 0.0
    %100 = vadd.xlane.f32.xlu0 %v99
    %v101 = vpop.xlane.xlu0 %100
    %v102 = vsel %vm89, %v77, 0.0
    %103 = vadd.xlane.f32.xlu0 %v102
    %v104 = vpop.xlane.xlu0 %103
    %v105 = vsel %vm89, %v78, 0.0
    %106 = vadd.xlane.f32.xlu0 %v105
    %v107 = vpop.xlane.xlu0 %106
    %v108 = vsel %vm89, %v79, 0.0
    %109 = vadd.xlane.f32.xlu0 %v108
    %v110 = vpop.xlane.xlu0 %109
    %v111 = vsel %vm89, %v80, 0.0
    %112 = vadd.xlane.f32.xlu0 %v111
    %v113 = vpop.xlane.xlu0 %112
    %v114 = vsel %vm89, %v81, 0.0
    %115 = vadd.xlane.f32.xlu0 %v114
    %v116 = vpop.xlane.xlu0 %115
    %v117 = vsel %vm89, %v82, 0.0
    %118 = vadd.xlane.f32.xlu0 %v117
    %v119 = vpop.xlane.xlu0 %118
    %v120 = vsel %vm89, %v83, 0.0
    %121 = vadd.xlane.f32.xlu0 %v120
    %v122 = vpop.xlane.xlu0 %121
    %v123 = vsel %vm89, %v84, 0.0
    %124 = vadd.xlane.f32.xlu0 %v123
    %v125 = vpop.xlane.xlu0 %124
    %v126 = vsel %vm89, %v85, 0.0
    %127 = vadd.xlane.f32.xlu0 %v126
    %v128 = vpop.xlane.xlu0 %127
    %v129 = vsel %vm89, %v86, 0.0
    %130 = vadd.xlane.f32.xlu0 %v129
    %v131 = vpop.xlane.xlu0 %130
    %v132 = vsel %vm89, %v87, 0.0
    %133 = vadd.xlane.f32.xlu0 %v132
    %v134 = vpop.xlane.xlu0 %133
    %v135 = vsel %vm89, %v88, 0.0
    %136 = vadd.xlane.f32.xlu0 %v135
    %v137 = vpop.xlane.xlu0 %136
    %v138 = vstv %s66
    %v139 = vadd.f32 %v92, %v138
    %v140 = vadd.f32 %v95, %v138
    %v141 = vadd.f32 %v98, %v138
    %v142 = vadd.f32 %v101, %v138
    %v143 = vadd.f32 %v104, %v138
    %v144 = vadd.f32 %v107, %v138
    %v145 = vadd.f32 %v110, %v138
    %v146 = vadd.f32 %v113, %v138
    %v147 = vadd.f32 %v116, %v138
    %v148 = vadd.f32 %v119, %v138
    %v149 = vadd.f32 %v122, %v138
    %v150 = vadd.f32 %v125, %v138
    %v151 = vadd.f32 %v128, %v138
    %v152 = vadd.f32 %v131, %v138
    %v153 = vadd.f32 %v134, %v138
    %v154 = vadd.f32 %v137, %v138
    %v155 = vmax.f32 %v139, 0.0
    %v156 = vmax.f32 %v140, 0.0
    %v157 = vmax.f32 %v141, 0.0
    %v158 = vmax.f32 %v142, 0.0
    %v159 = vmax.f32 %v143, 0.0
    %v160 = vmax.f32 %v144, 0.0
    %v161 = vmax.f32 %v145, 0.0
    %v162 = vmax.f32 %v146, 0.0
    %v163 = vmax.f32 %v147, 0.0
    %v164 = vmax.f32 %v148, 0.0
    %v165 = vmax.f32 %v149, 0.0
    %v166 = vmax.f32 %v150, 0.0
    %v167 = vmax.f32 %v151, 0.0
    %v168 = vmax.f32 %v152, 0.0
    %v169 = vmax.f32 %v153, 0.0
    %v170 = vmax.f32 %v154, 0.0
    %v171 = vmul.f32 %v155, %v49
    %v172 = vmul.f32 %v156, %v50
    %v173 = vmul.f32 %v157, %v51
    %v174 = vmul.f32 %v158, %v52
    %v175 = vmul.f32 %v159, %v53
    %v176 = vmul.f32 %v160, %v54
    %v177 = vmul.f32 %v161, %v55
    %v178 = vmul.f32 %v162, %v56
    %v179 = vmul.f32 %v163, %v57
    %v180 = vmul.f32 %v164, %v58
    %v181 = vmul.f32 %v165, %v59
    %v182 = vmul.f32 %v166, %v60
    %v183 = vmul.f32 %v167, %v61
    %v184 = vmul.f32 %v168, %v62
    %v185 = vmul.f32 %v169, %v63
    %v186 = vmul.f32 %v170, %v64
    %v187 = vsel %vm89, %v171, 0.0
    %v188 = vsel %vm89, %v173, 0.0
    %v189 = vadd.f32 %v187, %v188
    %v190 = vsel %vm89, %v175, 0.0
    %v191 = vadd.f32 %v189, %v190
    %v192 = vsel %vm89, %v177, 0.0
    %v193 = vadd.f32 %v191, %v192
    %v194 = vsel %vm89, %v172, 0.0
    %v195 = vsel %vm89, %v174, 0.0
    %v196 = vadd.f32 %v194, %v195
    %v197 = vsel %vm89, %v176, 0.0
    %v198 = vadd.f32 %v196, %v197
    %v199 = vsel %vm89, %v178, 0.0
    %v200 = vadd.f32 %v198, %v199
    %v201 = vsel %vm89, %v179, 0.0
    %v202 = vsel %vm89, %v181, 0.0
    %v203 = vadd.f32 %v201, %v202
    %v204 = vsel %vm89, %v183, 0.0
    %v205 = vadd.f32 %v203, %v204
    %v206 = vsel %vm89, %v185, 0.0
    %v207 = vadd.f32 %v205, %v206
    %v208 = vsel %vm89, %v180, 0.0
    %v209 = vsel %vm89, %v182, 0.0
    %v210 = vadd.f32 %v208, %v209
    %v211 = vsel %vm89, %v184, 0.0
    %v212 = vadd.f32 %v210, %v211
    %v213 = vsel %vm89, %v186, 0.0
    %v214 = vadd.f32 %v212, %v213
    %s215 = sld [smem:[#allocation7]]
    %v216 = vstv %s215
    %v217 = vmul.f32 %v216, %v193
    %v218 = vmul.f32 %v216, %v200
    %v219 = vmul.f32 %v216, %v207
    %v220 = vmul.f32 %v216, %v214
    %s221 = sld [smem:[#allocation7 + $0x1]]
    %v222 = vstv %s221
    %v223 = vmul.f32 %v222, %v193
    %v224 = vmul.f32 %v222, %v200
    %v225 = vmul.f32 %v222, %v207
    %v226 = vmul.f32 %v222, %v214
    %s227 = sld [smem:[#allocation7 + $0x2]]
    %v228 = vstv %s227
    %v229 = vmul.f32 %v228, %v193
    %v230 = vmul.f32 %v228, %v200
    %v231 = vmul.f32 %v228, %v207
    %v232 = vmul.f32 %v228, %v214
    %s233 = sld [smem:[#allocation7 + $0x3]]
    %v234 = vstv %s233
    %v235 = vmul.f32 %v234, %v193
    %v236 = vmul.f32 %v234, %v200
    %v237 = vmul.f32 %v234, %v207
    %v238 = vmul.f32 %v234, %v214
    %s239 = sld [smem:[#allocation7 + $0x4]]
    %v240 = vstv %s239
    %v241 = vmul.f32 %v240, %v193
    %v242 = vmul.f32 %v240, %v200
    %v243 = vmul.f32 %v240, %v207
    %v244 = vmul.f32 %v240, %v214
    %s245 = sld [smem:[#allocation7 + $0x5]]
    %v246 = vstv %s245
    %v247 = vmul.f32 %v246, %v193
    %v248 = vmul.f32 %v246, %v200
    %v249 = vmul.f32 %v246, %v207
    %v250 = vmul.f32 %v246, %v214
    %s251 = sld [smem:[#allocation7 + $0x6]]
    %v252 = vstv %s251
    %v253 = vmul.f32 %v252, %v193
    %v254 = vmul.f32 %v252, %v200
    %v255 = vmul.f32 %v252, %v207
    %v256 = vmul.f32 %v252, %v214
    %s257 = sld [smem:[#allocation7 + $0x7]]
    %v258 = vstv %s257
    %v259 = vmul.f32 %v258, %v193
    %v260 = vmul.f32 %v258, %v200
    %v261 = vmul.f32 %v258, %v207
    %v262 = vmul.f32 %v258, %v214
    %267 = vrot.lane.b32.xlu0 %v223, 32
    %v268 = vpop.permute.xlu0 %267
    %269 = vrot.lane.b32.xlu0 %v224, 32
    %v270 = vpop.permute.xlu0 %269
    %271 = vrot.lane.b32.xlu0 %v225, 32
    %v272 = vpop.permute.xlu0 %271
    %273 = vrot.lane.b32.xlu0 %v226, 32
    %v274 = vpop.permute.xlu0 %273
    %283 = vrot.lane.b32.xlu0 %v229, 64
    %v284 = vpop.permute.xlu0 %283
    %285 = vrot.lane.b32.xlu0 %v230, 64
    %v286 = vpop.permute.xlu0 %285
    %287 = vrot.lane.b32.xlu0 %v231, 64
    %v288 = vpop.permute.xlu0 %287
    %289 = vrot.lane.b32.xlu0 %v232, 64
    %v290 = vpop.permute.xlu0 %289
    %299 = vrot.lane.b32.xlu0 %v235, 96
    %v300 = vpop.permute.xlu0 %299
    %301 = vrot.lane.b32.xlu0 %v236, 96
    %v302 = vpop.permute.xlu0 %301
    %303 = vrot.lane.b32.xlu0 %v237, 96
    %v304 = vpop.permute.xlu0 %303
    %305 = vrot.lane.b32.xlu0 %v238, 96
    %v306 = vpop.permute.xlu0 %305
    %315 = vrot.lane.b32.xlu0 %v247, 32
    %v316 = vpop.permute.xlu0 %315
    %317 = vrot.lane.b32.xlu0 %v248, 32
    %v318 = vpop.permute.xlu0 %317
    %319 = vrot.lane.b32.xlu0 %v249, 32
    %v320 = vpop.permute.xlu0 %319
    %321 = vrot.lane.b32.xlu0 %v250, 32
    %v322 = vpop.permute.xlu0 %321
    %331 = vrot.lane.b32.xlu0 %v253, 64
    %v332 = vpop.permute.xlu0 %331
    %333 = vrot.lane.b32.xlu0 %v254, 64
    %v334 = vpop.permute.xlu0 %333
    %335 = vrot.lane.b32.xlu0 %v255, 64
    %v336 = vpop.permute.xlu0 %335
    %337 = vrot.lane.b32.xlu0 %v256, 64
    %v338 = vpop.permute.xlu0 %337
    %347 = vrot.lane.b32.xlu0 %v259, 96
    %v348 = vpop.permute.xlu0 %347
    %349 = vrot.lane.b32.xlu0 %v260, 96
    %v350 = vpop.permute.xlu0 %349
    %351 = vrot.lane.b32.xlu0 %v261, 96
    %v352 = vpop.permute.xlu0 %351
    %353 = vrot.lane.b32.xlu0 %v262, 96
    %v354 = vpop.permute.xlu0 %353
    %v359 = vsel %vm89, %v217, %v268
    %v360 = vsel %vm89, %v218, %v270
    %v361 = vsel %vm89, %v219, %v272
    %v362 = vsel %vm89, %v220, %v274
    %vm363 = vcmask 523264
    %v364 = vsel %vm363, %v359, %v284
    %v365 = vsel %vm363, %v360, %v286
    %v366 = vsel %vm363, %v361, %v288
    %v367 = vsel %vm363, %v362, %v290
    %vm368 = vcmask 785408
    %v369 = vsel %vm368, %v364, %v300
    %v370 = vsel %vm368, %v365, %v302
    %v371 = vsel %vm368, %v366, %v304
    %v372 = vsel %vm368, %v367, %v306
    %v373 = vsel %vm89, %v241, %v316
    %v374 = vsel %vm89, %v242, %v318
    %v375 = vsel %vm89, %v243, %v320
    %v376 = vsel %vm89, %v244, %v322
    %v377 = vsel %vm363, %v373, %v332
    %v378 = vsel %vm363, %v374, %v334
    %v379 = vsel %vm363, %v375, %v336
    %v380 = vsel %vm363, %v376, %v338
    %v381 = vsel %vm368, %v377, %v348
    %v382 = vsel %vm368, %v378, %v350
    %v383 = vsel %vm368, %v379, %v352
    %v384 = vsel %vm368, %v380, %v354
    %385 = vst [vmem:[#allocation8] sm:$0xff] %v369
    %386 = vst [vmem:[#allocation8 + $0x8] sm:$0xff] %v381
    %387 = vst [vmem:[#allocation8 + $0x10] sm:$0xff] %v370
    %388 = vst [vmem:[#allocation8 + $0x18] sm:$0xff] %v382
    %389 = vst [vmem:[#allocation8 + $0x20] sm:$0xff] %v371
    %390 = vst [vmem:[#allocation8 + $0x28] sm:$0xff] %v383
    %391 = vst [vmem:[#allocation8 + $0x30] sm:$0xff] %v372
    %392 = vst [vmem:[#allocation8 + $0x38] sm:$0xff] %v384
    %397 = vrot.lane.b32.xlu0 %v51, 32
    %v398 = vpop.permute.xlu0 %397
    %399 = vrot.lane.b32.xlu0 %v52, 32
    %v400 = vpop.permute.xlu0 %399
    %401 = vrot.lane.b32.xlu0 %v59, 32
    %v402 = vpop.permute.xlu0 %401
    %403 = vrot.lane.b32.xlu0 %v60, 32
    %v404 = vpop.permute.xlu0 %403
    %413 = vrot.lane.b32.xlu0 %v53, 64
    %v414 = vpop.permute.xlu0 %413
    %415 = vrot.lane.b32.xlu0 %v54, 64
    %v416 = vpop.permute.xlu0 %415
    %417 = vrot.lane.b32.xlu0 %v61, 64
    %v418 = vpop.permute.xlu0 %417
    %419 = vrot.lane.b32.xlu0 %v62, 64
    %v420 = vpop.permute.xlu0 %419
    %429 = vrot.lane.b32.xlu0 %v55, 96
    %v430 = vpop.permute.xlu0 %429
    %431 = vrot.lane.b32.xlu0 %v56, 96
    %v432 = vpop.permute.xlu0 %431
    %433 = vrot.lane.b32.xlu0 %v63, 96
    %v434 = vpop.permute.xlu0 %433
    %435 = vrot.lane.b32.xlu0 %v64, 96
    %v436 = vpop.permute.xlu0 %435
    %v441 = vsel %vm89, %v49, %v398
    %v442 = vsel %vm89, %v50, %v400
    %v443 = vsel %vm89, %v57, %v402
    %v444 = vsel %vm89, %v58, %v404
    %v445 = vsel %vm363, %v441, %v414
    %v446 = vsel %vm363, %v442, %v416
    %v447 = vsel %vm363, %v443, %v418
    %v448 = vsel %vm363, %v444, %v420
    %v449 = vsel %vm368, %v445, %v430
    %v450 = vsel %vm368, %v446, %v432
    %v451 = vsel %vm368, %v447, %v434
    %v452 = vsel %vm368, %v448, %v436
    %453 = vst [vmem:[#allocation9] sm:$0xff] %v449
    %454 = vst [vmem:[#allocation9 + $0x8] sm:$0xff] %v450
    %455 = vst [vmem:[#allocation9 + $0x10] sm:$0xff] %v451
    %456 = vst [vmem:[#allocation9 + $0x18] sm:$0xff] %v452
    // Predicated region
    $region26: #{tpu_custom_call.1} parent=1 // pred_check
      _
    $region27: #{tpu_custom_call.1} parent=1 // pred_check_branch
      %458 = sbr.rel (0) target = $region29
    $region28: #{tpu_custom_call.1} parent=1 // pred_region
      %s460 = ssub.s32 1024, 1024
      %461 = vsyncadd [#allocation5], %s460
      %s462 = sshll.u32 [#allocation8], 4
      %s463 = int_to_ptr.vmem [resolvable:$true] %s462
      %468 = dma.vmem_to_hbm [thread:$0]  %s463, 1024, %s4, [#allocation5], 256, 256, 16
    $region29: #{tpu_custom_call.1} parent=1 // pred_fallthru
      _
    // Predicated region
    $region30: #{tpu_custom_call.1} parent=1 // pred_check
      _
    $region31: #{tpu_custom_call.1} parent=1 // pred_check_branch
      %470 = sbr.rel (0) target = $region33
    $region32: #{tpu_custom_call.1} parent=1 // pred_region
      %s472 = ssub.s32 512, 512
      %473 = vsyncadd [#allocation10], %s472
      %s474 = sshll.u32 [#allocation9], 4
      %s475 = int_to_ptr.vmem [resolvable:$true] %s474
      %480 = dma.vmem_to_hbm [thread:$0]  %s475, 512, %s5, [#allocation10], 128, 128, 8
    $region33: #{tpu_custom_call.1} parent=1 // pred_fallthru
      _
    // Predicated region
    $region34: #{tpu_custom_call.1} parent=1 // pred_check
      _
    $region35: #{tpu_custom_call.1} parent=1 // pred_check_branch
      %482 = sbr.rel (0) target = $region37
    $region36: #{tpu_custom_call.1} parent=1 // pred_region
      %483 = dma.done [#allocation5], 1024
    $region37: #{tpu_custom_call.1} parent=1 // pred_fallthru
      _
    // Predicated region
    $region38: #{tpu_custom_call.1} parent=1 // pred_check
      _
    $region39: #{tpu_custom_call.1} parent=1 // pred_check_branch
      %485 = sbr.rel (0) target = $region41
    $region40: #{tpu_custom_call.1} parent=1 // pred_region
      %486 = dma.done [#allocation10], 512
    $region41: #{tpu_custom_call.1} parent=1 // pred_fallthru
      _
    %487 = vsyncpa [#allocation4], 1
    %488 = vsyncpa [#allocation5], 1
    %489 = vsyncpa [#allocation10], 1
    %490 = vsyncpa [#allocation6], 1

</llo_original>
